<compile_context>
chip_gen: v5e
topology: v5e:2x2
jax: 0.10.0
libtpu: 0.0.40
codegen_flags: <defaults>
</compile_context>

<pallas_src>
import functools

import jax
import jax.numpy as jnp
from jax.experimental import pallas as pl
from jax.experimental.pallas import tpu as pltpu


def _fused_kernel(x_ref, pp_ref, pt_ref, bc_ref,
                  wp1, bp1, wp2, bp2,
                  wg1, bg1, wg2, bg2,
                  wv, bv, wo, bo,
                  wl1a, wl1b, bl1, wl2, bl2,
                  wf1, bf1, wf2, bf2,
                  out_ref, attn_ref):
    dot = lambda a, b: jnp.dot(a, b, preferred_element_type=jnp.float32)

    # ---- point_mlp over all (B*T*P) rows at once, then mean over points ----
    x = x_ref[...]                                            # (B*T*P, E)
    h = jnp.maximum(dot(x, wp1[...]) + bp1[...], 0.0)
    h2 = dot(h, wp2[...]) + bp2[...]                          # (B*T*P, H)
    tf = dot(pp_ref[...], h2)                                 # (B*T, H)  mean over P

    # ---- global context + global_mlp, batched over B ----
    gc = dot(pt_ref[...], tf)                                 # (B, H)    mean over T
    g1 = jnp.maximum(dot(gc, wg1[...]) + bg1[...], 0.0)
    g = dot(g1, wg2[...]) + bg2[...]                          # (B, H)

    # ---- MultiHeadAttention with seq_len == 1 (softmax == 1) ----
    v = dot(g, wv[...]) + bv[...]
    af = dot(v, wo[...]) + bo[...]                            # (B, H)
    attn_ref[...] = af

    # ---- local_mlp: concat folded into split weight, broadcast via matmul ----
    a_term = dot(bc_ref[...], dot(af, wl1b[...]))             # (B*T, H)
    l1 = jnp.maximum(dot(tf, wl1a[...]) + a_term + bl1[...], 0.0)
    lf = dot(l1, wl2[...]) + bl2[...]                         # (B*T, H)

    # ---- mean over tiles + final_mlp, batched over B ----
    ff = dot(pt_ref[...], lf)                                 # (B, H)
    f1 = jnp.maximum(dot(ff, wf1[...]) + bf1[...], 0.0)
    out_ref[...] = dot(f1, wf2[...]) + bf2[...]               # (B, E)


@jax.jit
def spatial_encoder_forward(x, p):
    B, T, P, E = x.shape
    H = p["wp1"].shape[1]
    f32 = jnp.float32

    x2d = x.reshape(B * T * P, E)
    b2d = lambda v: v.reshape(1, -1)

    # Constant pooling / broadcast matrices (constant-folded under jit):
    #   pool_P : mean over the P points of each (batch, tile) row-group
    #   pool_T : mean over the T tiles of each batch
    #   bcast_T: replicate one per-batch row to that batch's T tile rows
    pool_P = jnp.kron(jnp.eye(B * T, dtype=f32), jnp.full((1, P), 1.0 / P, f32))
    pool_T = jnp.kron(jnp.eye(B, dtype=f32), jnp.full((1, T), 1.0 / T, f32))
    bcast_T = jnp.kron(jnp.eye(B, dtype=f32), jnp.ones((T, 1), f32))

    wl1a, wl1b = p["wl1"][:H], p["wl1"][H:]

    inputs = [
        x2d, pool_P, pool_T, bcast_T,
        p["wp1"], b2d(p["bp1"]), p["wp2"], b2d(p["bp2"]),
        p["wg1"], b2d(p["bg1"]), p["wg2"], b2d(p["bg2"]),
        p["wv"], b2d(p["bv"]), p["wo"], b2d(p["bo"]),
        wl1a, wl1b, b2d(p["bl1"]), p["wl2"], b2d(p["bl2"]),
        p["wf1"], b2d(p["bf1"]), p["wf2"], b2d(p["bf2"]),
    ]
    # Every array block covers the full array (legal regardless of (8,128)).
    in_specs = [pl.BlockSpec(a.shape, lambda i, nd=a.ndim: (0,) * nd) for a in inputs]

    out, attn = pl.pallas_call(
        _fused_kernel,
        out_shape=(jax.ShapeDtypeStruct((B, E), f32),
                   jax.ShapeDtypeStruct((B, H), f32)),
        grid=(1,),
        in_specs=in_specs,
        out_specs=(pl.BlockSpec((B, E), lambda i: (0, 0)),
                   pl.BlockSpec((B, H), lambda i: (0, 0))),
        compiler_params=pltpu.CompilerParams(dimension_semantics=("arbitrary",)),
    )(*inputs)
    return out, attn


def init_params(key, E, H):
    ks = jax.random.split(key, 12)

    def lin(k, i, o):
        kw, kb = jax.random.split(k)
        return (jax.random.normal(kw, (i, o), jnp.float32) * 0.05,
                jax.random.normal(kb, (o,), jnp.float32) * 0.05)

    p = {}
    p["wp1"], p["bp1"] = lin(ks[0], E, H)          # point_mlp
    p["wp2"], p["bp2"] = lin(ks[1], H, H)
    p["wg1"], p["bg1"] = lin(ks[2], H, H)          # global_mlp
    p["wg2"], p["bg2"] = lin(ks[3], H, H)
    p["wq"], p["bq"] = lin(ks[4], H, H)            # q/k linears: cancel out for seq_len==1
    p["wk"], p["bk"] = lin(ks[5], H, H)
    p["wv"], p["bv"] = lin(ks[6], H, H)            # attention v_linear
    p["wo"], p["bo"] = lin(ks[7], H, H)            # attention out
    p["wl1"], p["bl1"] = lin(ks[8], 2 * H, H)      # local_mlp
    p["wl2"], p["bl2"] = lin(ks[9], H, H)
    p["wf1"], p["bf1"] = lin(ks[10], H, H)         # final_mlp
    p["wf2"], p["bf2"] = lin(ks[11], H, E)
    return p


def ref_forward(x, p):
    # pure-JAX reference (full MHA including the degenerate softmax)
    relu = jax.nn.relu
    B, T, P, E = x.shape
    pf = relu(x @ p["wp1"] + p["bp1"]) @ p["wp2"] + p["bp2"]
    tf = pf.mean(axis=2)
    gc = tf.mean(axis=1)
    g = relu(gc @ p["wg1"] + p["bg1"]) @ p["wg2"] + p["bg2"]
    H = g.shape[-1]
    nh = 4
    dk = H // nh
    q = (g @ p["wq"] + p["bq"]).reshape(B, nh, 1, dk)
    k = (g @ p["wk"] + p["bk"]).reshape(B, nh, 1, dk)
    v = (g @ p["wv"] + p["bv"]).reshape(B, nh, 1, dk)
    s = (q @ jnp.swapaxes(k, -1, -2)) / jnp.sqrt(jnp.float32(dk))
    a = jax.nn.softmax(s, axis=-1)
    ctx = (a @ v).reshape(B, H)
    af = ctx @ p["wo"] + p["bo"]
    li = jnp.concatenate([tf, jnp.broadcast_to(af[:, None, :], (B, T, H))], axis=-1)
    lf = relu(li @ p["wl1"] + p["bl1"]) @ p["wl2"] + p["bl2"]
    ff = lf.mean(axis=1)
    out = relu(ff @ p["wf1"] + p["bf1"]) @ p["wf2"] + p["bf2"]
    return out, af


if __name__ == "__main__":
    B, T, P, E, H = 2, 4, 8, 8, 32          # batch, n_tiles, n_points, embedding_dim, hidden_dim
    key = jax.random.PRNGKey(0)
    kx, kp = jax.random.split(key)
    x = jax.random.normal(kx, (B, T, P, E), jnp.float32)
    params = init_params(kp, E, H)

    out, attn = spatial_encoder_forward(x, params)
    (out, attn) = jax.block_until_ready((out, attn))

    with jax.default_matmul_precision("float32"):
        out_ref, attn_ref = ref_forward(x, params)

    assert out.shape == (B, E) and attn.shape == (B, H)
    assert jnp.allclose(out, out_ref, rtol=1e-3, atol=1e-3)
    assert jnp.allclose(attn, attn_ref, rtol=1e-3, atol=1e-3)
    print("KERNEL_OK")
</pallas_src>

<mosaic_0001>
module attributes {stable_mosaic.version = 11 : i64} {
  func.func @_fused_kernel(%arg0: i32, %arg1: memref<64x8xf32, #tpu.memory_space<vmem>>, %arg2: memref<8x64xf32, #tpu.memory_space<vmem>>, %arg3: memref<2x8xf32, #tpu.memory_space<vmem>>, %arg4: memref<8x2xf32, #tpu.memory_space<vmem>>, %arg5: memref<8x32xf32, #tpu.memory_space<vmem>>, %arg6: memref<1x32xf32, #tpu.memory_space<vmem>>, %arg7: memref<32x32xf32, #tpu.memory_space<vmem>>, %arg8: memref<1x32xf32, #tpu.memory_space<vmem>>, %arg9: memref<32x32xf32, #tpu.memory_space<vmem>>, %arg10: memref<1x32xf32, #tpu.memory_space<vmem>>, %arg11: memref<32x32xf32, #tpu.memory_space<vmem>>, %arg12: memref<1x32xf32, #tpu.memory_space<vmem>>, %arg13: memref<32x32xf32, #tpu.memory_space<vmem>>, %arg14: memref<1x32xf32, #tpu.memory_space<vmem>>, %arg15: memref<32x32xf32, #tpu.memory_space<vmem>>, %arg16: memref<1x32xf32, #tpu.memory_space<vmem>>, %arg17: memref<32x32xf32, #tpu.memory_space<vmem>>, %arg18: memref<32x32xf32, #tpu.memory_space<vmem>>, %arg19: memref<1x32xf32, #tpu.memory_space<vmem>>, %arg20: memref<32x32xf32, #tpu.memory_space<vmem>>, %arg21: memref<1x32xf32, #tpu.memory_space<vmem>>, %arg22: memref<32x32xf32, #tpu.memory_space<vmem>>, %arg23: memref<1x32xf32, #tpu.memory_space<vmem>>, %arg24: memref<32x8xf32, #tpu.memory_space<vmem>>, %arg25: memref<1x8xf32, #tpu.memory_space<vmem>>, %arg26: memref<2x8xf32, #tpu.memory_space<vmem>>, %arg27: memref<2x32xf32, #tpu.memory_space<vmem>>) attributes {dimension_semantics = [#tpu.dimension_semantics<arbitrary>], iteration_bounds = array<i64: 1>, scalar_prefetch = 0 : i64, scratch_operands = 0 : i64, tpu.core_type = #tpu.core_type<tc>, window_params = [{pipeline_mode = #tpu.pipeline_mode<synchronous>, transform_indices = @transform_0, window_bounds = array<i64: 64, 8>}, {pipeline_mode = #tpu.pipeline_mode<synchronous>, transform_indices = @transform_1, window_bounds = array<i64: 8, 64>}, {pipeline_mode = #tpu.pipeline_mode<synchronous>, transform_indices = @transform_2, window_bounds = array<i64: 2, 8>}, {pipeline_mode = #tpu.pipeline_mode<synchronous>, transform_indices = @transform_3, window_bounds = array<i64: 8, 2>}, {pipeline_mode = #tpu.pipeline_mode<synchronous>, transform_indices = @transform_4, window_bounds = array<i64: 8, 32>}, {pipeline_mode = #tpu.pipeline_mode<synchronous>, transform_indices = @transform_5, window_bounds = array<i64: 1, 32>}, {pipeline_mode = #tpu.pipeline_mode<synchronous>, transform_indices = @transform_6, window_bounds = array<i64: 32, 32>}, {pipeline_mode = #tpu.pipeline_mode<synchronous>, transform_indices = @transform_7, window_bounds = array<i64: 1, 32>}, {pipeline_mode = #tpu.pipeline_mode<synchronous>, transform_indices = @transform_8, window_bounds = array<i64: 32, 32>}, {pipeline_mode = #tpu.pipeline_mode<synchronous>, transform_indices = @transform_9, window_bounds = array<i64: 1, 32>}, {pipeline_mode = #tpu.pipeline_mode<synchronous>, transform_indices = @transform_10, window_bounds = array<i64: 32, 32>}, {pipeline_mode = #tpu.pipeline_mode<synchronous>, transform_indices = @transform_11, window_bounds = array<i64: 1, 32>}, {pipeline_mode = #tpu.pipeline_mode<synchronous>, transform_indices = @transform_12, window_bounds = array<i64: 32, 32>}, {pipeline_mode = #tpu.pipeline_mode<synchronous>, transform_indices = @transform_13, window_bounds = array<i64: 1, 32>}, {pipeline_mode = #tpu.pipeline_mode<synchronous>, transform_indices = @transform_14, window_bounds = array<i64: 32, 32>}, {pipeline_mode = #tpu.pipeline_mode<synchronous>, transform_indices = @transform_15, window_bounds = array<i64: 1, 32>}, {pipeline_mode = #tpu.pipeline_mode<synchronous>, transform_indices = @transform_16, window_bounds = array<i64: 32, 32>}, {pipeline_mode = #tpu.pipeline_mode<synchronous>, transform_indices = @transform_17, window_bounds = array<i64: 32, 32>}, {pipeline_mode = #tpu.pipeline_mode<synchronous>, transform_indices = @transform_18, window_bounds = array<i64: 1, 32>}, {pipeline_mode = #tpu.pipeline_mode<synchronous>, transform_indices = @transform_19, window_bounds = array<i64: 32, 32>}, {pipeline_mode = #tpu.pipeline_mode<synchronous>, transform_indices = @transform_20, window_bounds = array<i64: 1, 32>}, {pipeline_mode = #tpu.pipeline_mode<synchronous>, transform_indices = @transform_21, window_bounds = array<i64: 32, 32>}, {pipeline_mode = #tpu.pipeline_mode<synchronous>, transform_indices = @transform_22, window_bounds = array<i64: 1, 32>}, {pipeline_mode = #tpu.pipeline_mode<synchronous>, transform_indices = @transform_23, window_bounds = array<i64: 32, 8>}, {pipeline_mode = #tpu.pipeline_mode<synchronous>, transform_indices = @transform_24, window_bounds = array<i64: 1, 8>}, {pipeline_mode = #tpu.pipeline_mode<synchronous>, transform_indices = @transform_25, window_bounds = array<i64: 2, 8>}, {pipeline_mode = #tpu.pipeline_mode<synchronous>, transform_indices = @transform_26, window_bounds = array<i64: 2, 32>}]} {
    %c0 = arith.constant 0 : index
    %c0_0 = arith.constant 0 : index
    %0 = vector.load %arg1[%c0, %c0_0] : memref<64x8xf32, #tpu.memory_space<vmem>>, vector<64x8xf32>
    %c0_1 = arith.constant 0 : index
    %c0_2 = arith.constant 0 : index
    %1 = vector.load %arg5[%c0_1, %c0_2] : memref<8x32xf32, #tpu.memory_space<vmem>>, vector<8x32xf32>
    %cst = arith.constant dense<0.000000e+00> : vector<64x32xf32>
    %2 = tpu.matmul %0, %1, %cst {dimension_numbers = #tpu.dot_dimension_numbers<[1], [0], [0], [1], [0, 0, 1, 1], [], []>} : vector<64x8xf32>, vector<8x32xf32>, vector<64x32xf32> -> vector<64x32xf32>
    %c0_3 = arith.constant 0 : index
    %c0_4 = arith.constant 0 : index
    %3 = vector.load %arg6[%c0_3, %c0_4] : memref<1x32xf32, #tpu.memory_space<vmem>>, vector<1x32xf32>
    %4 = vector.broadcast %3 : vector<1x32xf32> to vector<64x32xf32>
    %5 = arith.addf %2, %4 : vector<64x32xf32>
    %cst_5 = arith.constant 0.000000e+00 : f32
    %6 = vector.broadcast %cst_5 : f32 to vector<64x32xf32>
    %7 = arith.maximumf %5, %6 : vector<64x32xf32>
    %c0_6 = arith.constant 0 : index
    %c0_7 = arith.constant 0 : index
    %8 = vector.load %arg7[%c0_6, %c0_7] : memref<32x32xf32, #tpu.memory_space<vmem>>, vector<32x32xf32>
    %cst_8 = arith.constant dense<0.000000e+00> : vector<64x32xf32>
    %9 = tpu.matmul %7, %8, %cst_8 {dimension_numbers = #tpu.dot_dimension_numbers<[1], [0], [0], [1], [0, 0, 1, 1], [], []>} : vector<64x32xf32>, vector<32x32xf32>, vector<64x32xf32> -> vector<64x32xf32>
    %c0_9 = arith.constant 0 : index
    %c0_10 = arith.constant 0 : index
    %10 = vector.load %arg8[%c0_9, %c0_10] : memref<1x32xf32, #tpu.memory_space<vmem>>, vector<1x32xf32>
    %11 = vector.broadcast %10 : vector<1x32xf32> to vector<64x32xf32>
    %12 = arith.addf %9, %11 : vector<64x32xf32>
    %c0_11 = arith.constant 0 : index
    %c0_12 = arith.constant 0 : index
    %13 = vector.load %arg2[%c0_11, %c0_12] : memref<8x64xf32, #tpu.memory_space<vmem>>, vector<8x64xf32>
    %cst_13 = arith.constant dense<0.000000e+00> : vector<8x32xf32>
    %14 = tpu.matmul %13, %12, %cst_13 {dimension_numbers = #tpu.dot_dimension_numbers<[1], [0], [0], [1], [0, 0, 1, 1], [], []>} : vector<8x64xf32>, vector<64x32xf32>, vector<8x32xf32> -> vector<8x32xf32>
    %c0_14 = arith.constant 0 : index
    %c0_15 = arith.constant 0 : index
    %15 = vector.load %arg3[%c0_14, %c0_15] : memref<2x8xf32, #tpu.memory_space<vmem>>, vector<2x8xf32>
    %cst_16 = arith.constant dense<0.000000e+00> : vector<2x32xf32>
    %16 = tpu.matmul %15, %14, %cst_16 {dimension_numbers = #tpu.dot_dimension_numbers<[1], [0], [0], [1], [0, 0, 1, 1], [], []>} : vector<2x8xf32>, vector<8x32xf32>, vector<2x32xf32> -> vector<2x32xf32>
    %c0_17 = arith.constant 0 : index
    %c0_18 = arith.constant 0 : index
    %17 = vector.load %arg9[%c0_17, %c0_18] : memref<32x32xf32, #tpu.memory_space<vmem>>, vector<32x32xf32>
    %cst_19 = arith.constant dense<0.000000e+00> : vector<2x32xf32>
    %18 = tpu.matmul %16, %17, %cst_19 {dimension_numbers = #tpu.dot_dimension_numbers<[1], [0], [0], [1], [0, 0, 1, 1], [], []>} : vector<2x32xf32>, vector<32x32xf32>, vector<2x32xf32> -> vector<2x32xf32>
    %c0_20 = arith.constant 0 : index
    %c0_21 = arith.constant 0 : index
    %19 = vector.load %arg10[%c0_20, %c0_21] : memref<1x32xf32, #tpu.memory_space<vmem>>, vector<1x32xf32>
    %20 = vector.broadcast %19 : vector<1x32xf32> to vector<2x32xf32>
    %21 = arith.addf %18, %20 : vector<2x32xf32>
    %cst_22 = arith.constant 0.000000e+00 : f32
    %22 = vector.broadcast %cst_22 : f32 to vector<2x32xf32>
    %23 = arith.maximumf %21, %22 : vector<2x32xf32>
    %c0_23 = arith.constant 0 : index
    %c0_24 = arith.constant 0 : index
    %24 = vector.load %arg11[%c0_23, %c0_24] : memref<32x32xf32, #tpu.memory_space<vmem>>, vector<32x32xf32>
    %cst_25 = arith.constant dense<0.000000e+00> : vector<2x32xf32>
    %25 = tpu.matmul %23, %24, %cst_25 {dimension_numbers = #tpu.dot_dimension_numbers<[1], [0], [0], [1], [0, 0, 1, 1], [], []>} : vector<2x32xf32>, vector<32x32xf32>, vector<2x32xf32> -> vector<2x32xf32>
    %c0_26 = arith.constant 0 : index
    %c0_27 = arith.constant 0 : index
    %26 = vector.load %arg12[%c0_26, %c0_27] : memref<1x32xf32, #tpu.memory_space<vmem>>, vector<1x32xf32>
    %27 = vector.broadcast %26 : vector<1x32xf32> to vector<2x32xf32>
    %28 = arith.addf %25, %27 : vector<2x32xf32>
    %c0_28 = arith.constant 0 : index
    %c0_29 = arith.constant 0 : index
    %29 = vector.load %arg13[%c0_28, %c0_29] : memref<32x32xf32, #tpu.memory_space<vmem>>, vector<32x32xf32>
    %cst_30 = arith.constant dense<0.000000e+00> : vector<2x32xf32>
    %30 = tpu.matmul %28, %29, %cst_30 {dimension_numbers = #tpu.dot_dimension_numbers<[1], [0], [0], [1], [0, 0, 1, 1], [], []>} : vector<2x32xf32>, vector<32x32xf32>, vector<2x32xf32> -> vector<2x32xf32>
    %c0_31 = arith.constant 0 : index
    %c0_32 = arith.constant 0 : index
    %31 = vector.load %arg14[%c0_31, %c0_32] : memref<1x32xf32, #tpu.memory_space<vmem>>, vector<1x32xf32>
    %32 = vector.broadcast %31 : vector<1x32xf32> to vector<2x32xf32>
    %33 = arith.addf %30, %32 : vector<2x32xf32>
    %c0_33 = arith.constant 0 : index
    %c0_34 = arith.constant 0 : index
    %34 = vector.load %arg15[%c0_33, %c0_34] : memref<32x32xf32, #tpu.memory_space<vmem>>, vector<32x32xf32>
    %cst_35 = arith.constant dense<0.000000e+00> : vector<2x32xf32>
    %35 = tpu.matmul %33, %34, %cst_35 {dimension_numbers = #tpu.dot_dimension_numbers<[1], [0], [0], [1], [0, 0, 1, 1], [], []>} : vector<2x32xf32>, vector<32x32xf32>, vector<2x32xf32> -> vector<2x32xf32>
    %c0_36 = arith.constant 0 : index
    %c0_37 = arith.constant 0 : index
    %36 = vector.load %arg16[%c0_36, %c0_37] : memref<1x32xf32, #tpu.memory_space<vmem>>, vector<1x32xf32>
    %37 = vector.broadcast %36 : vector<1x32xf32> to vector<2x32xf32>
    %38 = arith.addf %35, %37 : vector<2x32xf32>
    %c0_38 = arith.constant 0 : index
    %c0_39 = arith.constant 0 : index
    %39 = vector.load %arg27[%c0_38, %c0_39] : memref<2x32xf32, #tpu.memory_space<vmem>>, vector<2x32xf32>
    tpu.vector_store %arg27[%c0_38, %c0_39], %38 {strides = array<i32>} : memref<2x32xf32, #tpu.memory_space<vmem>>, vector<2x32xf32>,
    %c0_40 = arith.constant 0 : index
    %c0_41 = arith.constant 0 : index
    %40 = vector.load %arg4[%c0_40, %c0_41] : memref<8x2xf32, #tpu.memory_space<vmem>>, vector<8x2xf32>
    %c0_42 = arith.constant 0 : index
    %c0_43 = arith.constant 0 : index
    %41 = vector.load %arg18[%c0_42, %c0_43] : memref<32x32xf32, #tpu.memory_space<vmem>>, vector<32x32xf32>
    %cst_44 = arith.constant dense<0.000000e+00> : vector<2x32xf32>
    %42 = tpu.matmul %38, %41, %cst_44 {dimension_numbers = #tpu.dot_dimension_numbers<[1], [0], [0], [1], [0, 0, 1, 1], [], []>} : vector<2x32xf32>, vector<32x32xf32>, vector<2x32xf32> -> vector<2x32xf32>
    %cst_45 = arith.constant dense<0.000000e+00> : vector<8x32xf32>
    %43 = tpu.matmul %40, %42, %cst_45 {dimension_numbers = #tpu.dot_dimension_numbers<[1], [0], [0], [1], [0, 0, 1, 1], [], []>} : vector<8x2xf32>, vector<2x32xf32>, vector<8x32xf32> -> vector<8x32xf32>
    %c0_46 = arith.constant 0 : index
    %c0_47 = arith.constant 0 : index
    %44 = vector.load %arg17[%c0_46, %c0_47] : memref<32x32xf32, #tpu.memory_space<vmem>>, vector<32x32xf32>
    %cst_48 = arith.constant dense<0.000000e+00> : vector<8x32xf32>
    %45 = tpu.matmul %14, %44, %cst_48 {dimension_numbers = #tpu.dot_dimension_numbers<[1], [0], [0], [1], [0, 0, 1, 1], [], []>} : vector<8x32xf32>, vector<32x32xf32>, vector<8x32xf32> -> vector<8x32xf32>
    %46 = arith.addf %45, %43 : vector<8x32xf32>
    %c0_49 = arith.constant 0 : index
    %c0_50 = arith.constant 0 : index
    %47 = vector.load %arg19[%c0_49, %c0_50] : memref<1x32xf32, #tpu.memory_space<vmem>>, vector<1x32xf32>
    %48 = vector.broadcast %47 : vector<1x32xf32> to vector<8x32xf32>
    %49 = arith.addf %46, %48 : vector<8x32xf32>
    %cst_51 = arith.constant 0.000000e+00 : f32
    %50 = vector.broadcast %cst_51 : f32 to vector<8x32xf32>
    %51 = arith.maximumf %49, %50 : vector<8x32xf32>
    %c0_52 = arith.constant 0 : index
    %c0_53 = arith.constant 0 : index
    %52 = vector.load %arg20[%c0_52, %c0_53] : memref<32x32xf32, #tpu.memory_space<vmem>>, vector<32x32xf32>
    %cst_54 = arith.constant dense<0.000000e+00> : vector<8x32xf32>
    %53 = tpu.matmul %51, %52, %cst_54 {dimension_numbers = #tpu.dot_dimension_numbers<[1], [0], [0], [1], [0, 0, 1, 1], [], []>} : vector<8x32xf32>, vector<32x32xf32>, vector<8x32xf32> -> vector<8x32xf32>
    %c0_55 = arith.constant 0 : index
    %c0_56 = arith.constant 0 : index
    %54 = vector.load %arg21[%c0_55, %c0_56] : memref<1x32xf32, #tpu.memory_space<vmem>>, vector<1x32xf32>
    %55 = vector.broadcast %54 : vector<1x32xf32> to vector<8x32xf32>
    %56 = arith.addf %53, %55 : vector<8x32xf32>
    %c0_57 = arith.constant 0 : index
    %c0_58 = arith.constant 0 : index
    %57 = vector.load %arg3[%c0_57, %c0_58] : memref<2x8xf32, #tpu.memory_space<vmem>>, vector<2x8xf32>
    %cst_59 = arith.constant dense<0.000000e+00> : vector<2x32xf32>
    %58 = tpu.matmul %57, %56, %cst_59 {dimension_numbers = #tpu.dot_dimension_numbers<[1], [0], [0], [1], [0, 0, 1, 1], [], []>} : vector<2x8xf32>, vector<8x32xf32>, vector<2x32xf32> -> vector<2x32xf32>
    %c0_60 = arith.constant 0 : index
    %c0_61 = arith.constant 0 : index
    %59 = vector.load %arg22[%c0_60, %c0_61] : memref<32x32xf32, #tpu.memory_space<vmem>>, vector<32x32xf32>
    %cst_62 = arith.constant dense<0.000000e+00> : vector<2x32xf32>
    %60 = tpu.matmul %58, %59, %cst_62 {dimension_numbers = #tpu.dot_dimension_numbers<[1], [0], [0], [1], [0, 0, 1, 1], [], []>} : vector<2x32xf32>, vector<32x32xf32>, vector<2x32xf32> -> vector<2x32xf32>
    %c0_63 = arith.constant 0 : index
    %c0_64 = arith.constant 0 : index
    %61 = vector.load %arg23[%c0_63, %c0_64] : memref<1x32xf32, #tpu.memory_space<vmem>>, vector<1x32xf32>
    %62 = vector.broadcast %61 : vector<1x32xf32> to vector<2x32xf32>
    %63 = arith.addf %60, %62 : vector<2x32xf32>
    %cst_65 = arith.constant 0.000000e+00 : f32
    %64 = vector.broadcast %cst_65 : f32 to vector<2x32xf32>
    %65 = arith.maximumf %63, %64 : vector<2x32xf32>
    %c0_66 = arith.constant 0 : index
    %c0_67 = arith.constant 0 : index
    %66 = vector.load %arg24[%c0_66, %c0_67] : memref<32x8xf32, #tpu.memory_space<vmem>>, vector<32x8xf32>
    %cst_68 = arith.constant dense<0.000000e+00> : vector<2x8xf32>
    %67 = tpu.matmul %65, %66, %cst_68 {dimension_numbers = #tpu.dot_dimension_numbers<[1], [0], [0], [1], [0, 0, 1, 1], [], []>} : vector<2x32xf32>, vector<32x8xf32>, vector<2x8xf32> -> vector<2x8xf32>
    %c0_69 = arith.constant 0 : index
    %c0_70 = arith.constant 0 : index
    %68 = vector.load %arg25[%c0_69, %c0_70] : memref<1x8xf32, #tpu.memory_space<vmem>>, vector<1x8xf32>
    %69 = vector.broadcast %68 : vector<1x8xf32> to vector<2x8xf32>
    %70 = arith.addf %67, %69 : vector<2x8xf32>
    %c0_71 = arith.constant 0 : index
    %c0_72 = arith.constant 0 : index
    %71 = vector.load %arg26[%c0_71, %c0_72] : memref<2x8xf32, #tpu.memory_space<vmem>>, vector<2x8xf32>
    tpu.vector_store %arg26[%c0_71, %c0_72], %70 {strides = array<i32>} : memref<2x8xf32, #tpu.memory_space<vmem>>, vector<2x8xf32>,
    return
  }
  func.func @transform_0(%arg0: i32) -> (i32, i32) {
    %c0_i32 = arith.constant 0 : i32
    %c0_i32_0 = arith.constant 0 : i32
    %c0_i32_1 = arith.constant 0 : i32
    return %c0_i32, %c0_i32_0 : i32, i32
  }
  func.func @transform_1(%arg0: i32) -> (i32, i32) {
    %c0_i32 = arith.constant 0 : i32
    %c0_i32_0 = arith.constant 0 : i32
    %c0_i32_1 = arith.constant 0 : i32
    return %c0_i32, %c0_i32_0 : i32, i32
  }
  func.func @transform_2(%arg0: i32) -> (i32, i32) {
    %c0_i32 = arith.constant 0 : i32
    %c0_i32_0 = arith.constant 0 : i32
    %c0_i32_1 = arith.constant 0 : i32
    return %c0_i32, %c0_i32_0 : i32, i32
  }
  func.func @transform_3(%arg0: i32) -> (i32, i32) {
    %c0_i32 = arith.constant 0 : i32
    %c0_i32_0 = arith.constant 0 : i32
    %c0_i32_1 = arith.constant 0 : i32
    return %c0_i32, %c0_i32_0 : i32, i32
  }
  func.func @transform_4(%arg0: i32) -> (i32, i32) {
    %c0_i32 = arith.constant 0 : i32
    %c0_i32_0 = arith.constant 0 : i32
    %c0_i32_1 = arith.constant 0 : i32
    return %c0_i32, %c0_i32_0 : i32, i32
  }
  func.func @transform_5(%arg0: i32) -> (i32, i32) {
    %c0_i32 = arith.constant 0 : i32
    %c0_i32_0 = arith.constant 0 : i32
    %c0_i32_1 = arith.constant 0 : i32
    return %c0_i32, %c0_i32_0 : i32, i32
  }
  func.func @transform_6(%arg0: i32) -> (i32, i32) {
    %c0_i32 = arith.constant 0 : i32
    %c0_i32_0 = arith.constant 0 : i32
    %c0_i32_1 = arith.constant 0 : i32
    return %c0_i32, %c0_i32_0 : i32, i32
  }
  func.func @transform_7(%arg0: i32) -> (i32, i32) {
    %c0_i32 = arith.constant 0 : i32
    %c0_i32_0 = arith.constant 0 : i32
    %c0_i32_1 = arith.constant 0 : i32
    return %c0_i32, %c0_i32_0 : i32, i32
  }
  func.func @transform_8(%arg0: i32) -> (i32, i32) {
    %c0_i32 = arith.constant 0 : i32
    %c0_i32_0 = arith.constant 0 : i32
    %c0_i32_1 = arith.constant 0 : i32
    return %c0_i32, %c0_i32_0 : i32, i32
  }
  func.func @transform_9(%arg0: i32) -> (i32, i32) {
    %c0_i32 = arith.constant 0 : i32
    %c0_i32_0 = arith.constant 0 : i32
    %c0_i32_1 = arith.constant 0 : i32
    return %c0_i32, %c0_i32_0 : i32, i32
  }
  func.func @transform_10(%arg0: i32) -> (i32, i32) {
    %c0_i32 = arith.constant 0 : i32
    %c0_i32_0 = arith.constant 0 : i32
    %c0_i32_1 = arith.constant 0 : i32
    return %c0_i32, %c0_i32_0 : i32, i32
  }
  func.func @transform_11(%arg0: i32) -> (i32, i32) {
    %c0_i32 = arith.constant 0 : i32
    %c0_i32_0 = arith.constant 0 : i32
    %c0_i32_1 = arith.constant 0 : i32
    return %c0_i32, %c0_i32_0 : i32, i32
  }
  func.func @transform_12(%arg0: i32) -> (i32, i32) {
    %c0_i32 = arith.constant 0 : i32
    %c0_i32_0 = arith.constant 0 : i32
    %c0_i32_1 = arith.constant 0 : i32
    return %c0_i32, %c0_i32_0 : i32, i32
  }
  func.func @transform_13(%arg0: i32) -> (i32, i32) {
    %c0_i32 = arith.constant 0 : i32
    %c0_i32_0 = arith.constant 0 : i32
    %c0_i32_1 = arith.constant 0 : i32
    return %c0_i32, %c0_i32_0 : i32, i32
  }
  func.func @transform_14(%arg0: i32) -> (i32, i32) {
    %c0_i32 = arith.constant 0 : i32
    %c0_i32_0 = arith.constant 0 : i32
    %c0_i32_1 = arith.constant 0 : i32
    return %c0_i32, %c0_i32_0 : i32, i32
  }
  func.func @transform_15(%arg0: i32) -> (i32, i32) {
    %c0_i32 = arith.constant 0 : i32
    %c0_i32_0 = arith.constant 0 : i32
    %c0_i32_1 = arith.constant 0 : i32
    return %c0_i32, %c0_i32_0 : i32, i32
  }
  func.func @transform_16(%arg0: i32) -> (i32, i32) {
    %c0_i32 = arith.constant 0 : i32
    %c0_i32_0 = arith.constant 0 : i32
    %c0_i32_1 = arith.constant 0 : i32
    return %c0_i32, %c0_i32_0 : i32, i32
  }
  func.func @transform_17(%arg0: i32) -> (i32, i32) {
    %c0_i32 = arith.constant 0 : i32
    %c0_i32_0 = arith.constant 0 : i32
    %c0_i32_1 = arith.constant 0 : i32
    return %c0_i32, %c0_i32_0 : i32, i32
  }
  func.func @transform_18(%arg0: i32) -> (i32, i32) {
    %c0_i32 = arith.constant 0 : i32
    %c0_i32_0 = arith.constant 0 : i32
    %c0_i32_1 = arith.constant 0 : i32
    return %c0_i32, %c0_i32_0 : i32, i32
  }
  func.func @transform_19(%arg0: i32) -> (i32, i32) {
    %c0_i32 = arith.constant 0 : i32
    %c0_i32_0 = arith.constant 0 : i32
    %c0_i32_1 = arith.constant 0 : i32
    return %c0_i32, %c0_i32_0 : i32, i32
  }
  func.func @transform_20(%arg0: i32) -> (i32, i32) {
    %c0_i32 = arith.constant 0 : i32
    %c0_i32_0 = arith.constant 0 : i32
    %c0_i32_1 = arith.constant 0 : i32
    return %c0_i32, %c0_i32_0 : i32, i32
  }
  func.func @transform_21(%arg0: i32) -> (i32, i32) {
    %c0_i32 = arith.constant 0 : i32
    %c0_i32_0 = arith.constant 0 : i32
    %c0_i32_1 = arith.constant 0 : i32
    return %c0_i32, %c0_i32_0 : i32, i32
  }
  func.func @transform_22(%arg0: i32) -> (i32, i32) {
    %c0_i32 = arith.constant 0 : i32
    %c0_i32_0 = arith.constant 0 : i32
    %c0_i32_1 = arith.constant 0 : i32
    return %c0_i32, %c0_i32_0 : i32, i32
  }
  func.func @transform_23(%arg0: i32) -> (i32, i32) {
    %c0_i32 = arith.constant 0 : i32
    %c0_i32_0 = arith.constant 0 : i32
    %c0_i32_1 = arith.constant 0 : i32
    return %c0_i32, %c0_i32_0 : i32, i32
  }
  func.func @transform_24(%arg0: i32) -> (i32, i32) {
    %c0_i32 = arith.constant 0 : i32
    %c0_i32_0 = arith.constant 0 : i32
    %c0_i32_1 = arith.constant 0 : i32
    return %c0_i32, %c0_i32_0 : i32, i32
  }
  func.func @transform_25(%arg0: i32) -> (i32, i32) {
    %c0_i32 = arith.constant 0 : i32
    %c0_i32_0 = arith.constant 0 : i32
    %c0_i32_1 = arith.constant 0 : i32
    return %c0_i32, %c0_i32_0 : i32, i32
  }
  func.func @transform_26(%arg0: i32) -> (i32, i32) {
    %c0_i32 = arith.constant 0 : i32
    %c0_i32_0 = arith.constant 0 : i32
    %c0_i32_1 = arith.constant 0 : i32
    return %c0_i32, %c0_i32_0 : i32, i32
  }
}

</mosaic_0001>

<llo_original>
// kernel: spatial_encoder_forward.1
$region0: #{spatial_encoder_forward.1}
  #allocation0 [shape = 'u32[]', space=smem, size = 0x4, offset = 0x4, fixed_abs, tag = 'smem constant byte address 0x4 - core index']
  #allocation1 [shape = 'u32[72,128]{1,0:T(1,128)}', space=vmem, size = 0x9000, scoped, tag = 'internal scratch']
  %s0 = inlined_call_operand.vmem [shape: f32[64,8], index: 0, kind: input, shape index: {}]
  %s1 = inlined_call_operand.vmem [shape: f32[8,64], index: 1, kind: input, shape index: {}]
  %s2 = inlined_call_operand.vmem [shape: f32[2,8], index: 2, kind: input, shape index: {}]
  %s3 = inlined_call_operand.vmem [shape: f32[8,2], index: 3, kind: input, shape index: {}]
  %s4 = inlined_call_operand.vmem [shape: f32[8,32], index: 4, kind: input, shape index: {}]
  %s5 = inlined_call_operand.vmem [shape: f32[1,32], index: 5, kind: input, shape index: {}]
  %s6 = inlined_call_operand.vmem [shape: f32[32,32], index: 6, kind: input, shape index: {}]
  %s7 = inlined_call_operand.vmem [shape: f32[1,32], index: 7, kind: input, shape index: {}]
  %s8 = inlined_call_operand.vmem [shape: f32[32,32], index: 8, kind: input, shape index: {}]
  %s9 = inlined_call_operand.vmem [shape: f32[1,32], index: 9, kind: input, shape index: {}]
  %s10 = inlined_call_operand.vmem [shape: f32[32,32], index: 10, kind: input, shape index: {}]
  %s11 = inlined_call_operand.vmem [shape: f32[1,32], index: 11, kind: input, shape index: {}]
  %s12 = inlined_call_operand.vmem [shape: f32[32,32], index: 12, kind: input, shape index: {}]
  %s13 = inlined_call_operand.vmem [shape: f32[1,32], index: 13, kind: input, shape index: {}]
  %s14 = inlined_call_operand.vmem [shape: f32[32,32], index: 14, kind: input, shape index: {}]
  %s15 = inlined_call_operand.vmem [shape: f32[1,32], index: 15, kind: input, shape index: {}]
  %s16 = inlined_call_operand.vmem [shape: f32[32,32], index: 16, kind: input, shape index: {}]
  %s17 = inlined_call_operand.vmem [shape: f32[32,32], index: 17, kind: input, shape index: {}]
  %s18 = inlined_call_operand.vmem [shape: f32[1,32], index: 18, kind: input, shape index: {}]
  %s19 = inlined_call_operand.vmem [shape: f32[32,32], index: 19, kind: input, shape index: {}]
  %s20 = inlined_call_operand.vmem [shape: f32[1,32], index: 20, kind: input, shape index: {}]
  %s21 = inlined_call_operand.vmem [shape: f32[32,32], index: 21, kind: input, shape index: {}]
  %s22 = inlined_call_operand.vmem [shape: f32[1,32], index: 22, kind: input, shape index: {}]
  %s23 = inlined_call_operand.vmem [shape: f32[32,8], index: 23, kind: input, shape index: {}]
  %s24 = inlined_call_operand.vmem [shape: f32[1,8], index: 24, kind: input, shape index: {}]
  %s25 = inlined_call_operand.hbm [shape: f32[2,8], index: 25, kind: output, shape index: {0}]
  %s26 = inlined_call_operand.hbm [shape: f32[2,32], index: 26, kind: output, shape index: {1}]
  %27 = xla_tuple %s25, %s26
  %s28 = sld [smem:[#allocation0]]
  $region118: #{spatial_encoder_forward.1} parent=0
    _
  %s30 = ssub.s32 1, %s28
  %s31 = scalar_select 0, %s30, %s28
  $region1: #{spatial_encoder_forward.1} parent=0
    #allocation2 [shape = 'u8[1024]{0}', space=vmem, size = 0x400, scoped, tag = 'output window, operand 0, single buffered']
    #allocation3 [shape = 's32[1]{0}', space=sflag, size = 0x4, scoped, tag = 'scoped memory for spatial_encoder_forward.1']
    #allocation4 [shape = 'u8[1024]{0}', space=vmem, size = 0x400, scoped, tag = 'output window, operand 1, single buffered']
    #allocation5 [shape = 's32[1]{0}', space=sflag, size = 0x4, scoped, tag = 'scoped memory for spatial_encoder_forward.1']
    %32 = vsyncpa [#allocation3], 0
    %33 = vsyncpa [#allocation5], 0
    // Predicated region
    $region2: #{spatial_encoder_forward.1} parent=1 // pred_check
      _
    $region3: #{spatial_encoder_forward.1} parent=1 // pred_check_branch
      %35 = sbr.rel (0) target = $region5
    $region4: #{spatial_encoder_forward.1} parent=1 // pred_region
      _
    $region5: #{spatial_encoder_forward.1} parent=1 // pred_fallthru
      _
    // Predicated region
    $region6: #{spatial_encoder_forward.1} parent=1 // pred_check
      _
    $region7: #{spatial_encoder_forward.1} parent=1 // pred_check_branch
      %37 = sbr.rel (0) target = $region9
    $region8: #{spatial_encoder_forward.1} parent=1 // pred_region
      _
    $region9: #{spatial_encoder_forward.1} parent=1 // pred_fallthru
      _
    // Predicated region
    $region10: #{spatial_encoder_forward.1} parent=1 // pred_check
      _
    $region11: #{spatial_encoder_forward.1} parent=1 // pred_check_branch
      %39 = sbr.rel (0) target = $region13
    $region12: #{spatial_encoder_forward.1} parent=1 // pred_region
      _
    $region13: #{spatial_encoder_forward.1} parent=1 // pred_fallthru
      _
    // Predicated region
    $region14: #{spatial_encoder_forward.1} parent=1 // pred_check
      _
    $region15: #{spatial_encoder_forward.1} parent=1 // pred_check_branch
      %41 = sbr.rel (0) target = $region17
    $region16: #{spatial_encoder_forward.1} parent=1 // pred_region
      _
    $region17: #{spatial_encoder_forward.1} parent=1 // pred_fallthru
      _
    // Predicated region
    $region18: #{spatial_encoder_forward.1} parent=1 // pred_check
      _
    $region19: #{spatial_encoder_forward.1} parent=1 // pred_check_branch
      %43 = sbr.rel (0) target = $region21
    $region20: #{spatial_encoder_forward.1} parent=1 // pred_region
      _
    $region21: #{spatial_encoder_forward.1} parent=1 // pred_fallthru
      _
    // Predicated region
    $region22: #{spatial_encoder_forward.1} parent=1 // pred_check
      _
    $region23: #{spatial_encoder_forward.1} parent=1 // pred_check_branch
      %45 = sbr.rel (0) target = $region25
    $region24: #{spatial_encoder_forward.1} parent=1 // pred_region
      _
    $region25: #{spatial_encoder_forward.1} parent=1 // pred_fallthru
      _
    // Predicated region
    $region26: #{spatial_encoder_forward.1} parent=1 // pred_check
      _
    $region27: #{spatial_encoder_forward.1} parent=1 // pred_check_branch
      %47 = sbr.rel (0) target = $region29
    $region28: #{spatial_encoder_forward.1} parent=1 // pred_region
      _
    $region29: #{spatial_encoder_forward.1} parent=1 // pred_fallthru
      _
    // Predicated region
    $region30: #{spatial_encoder_forward.1} parent=1 // pred_check
      _
    $region31: #{spatial_encoder_forward.1} parent=1 // pred_check_branch
      %49 = sbr.rel (0) target = $region33
    $region32: #{spatial_encoder_forward.1} parent=1 // pred_region
      _
    $region33: #{spatial_encoder_forward.1} parent=1 // pred_fallthru
      _
    // Predicated region
    $region34: #{spatial_encoder_forward.1} parent=1 // pred_check
      _
    $region35: #{spatial_encoder_forward.1} parent=1 // pred_check_branch
      %51 = sbr.rel (0) target = $region37
    $region36: #{spatial_encoder_forward.1} parent=1 // pred_region
      _
    $region37: #{spatial_encoder_forward.1} parent=1 // pred_fallthru
      _
    // Predicated region
    $region38: #{spatial_encoder_forward.1} parent=1 // pred_check
      _
    $region39: #{spatial_encoder_forward.1} parent=1 // pred_check_branch
      %53 = sbr.rel (0) target = $region41
    $region40: #{spatial_encoder_forward.1} parent=1 // pred_region
      _
    $region41: #{spatial_encoder_forward.1} parent=1 // pred_fallthru
      _
    // Predicated region
    $region42: #{spatial_encoder_forward.1} parent=1 // pred_check
      _
    $region43: #{spatial_encoder_forward.1} parent=1 // pred_check_branch
      %55 = sbr.rel (0) target = $region45
    $region44: #{spatial_encoder_forward.1} parent=1 // pred_region
      _
    $region45: #{spatial_encoder_forward.1} parent=1 // pred_fallthru
      _
    // Predicated region
    $region46: #{spatial_encoder_forward.1} parent=1 // pred_check
      _
    $region47: #{spatial_encoder_forward.1} parent=1 // pred_check_branch
      %57 = sbr.rel (0) target = $region49
    $region48: #{spatial_encoder_forward.1} parent=1 // pred_region
      _
    $region49: #{spatial_encoder_forward.1} parent=1 // pred_fallthru
      _
    // Predicated region
    $region50: #{spatial_encoder_forward.1} parent=1 // pred_check
      _
    $region51: #{spatial_encoder_forward.1} parent=1 // pred_check_branch
      %59 = sbr.rel (0) target = $region53
    $region52: #{spatial_encoder_forward.1} parent=1 // pred_region
      _
    $region53: #{spatial_encoder_forward.1} parent=1 // pred_fallthru
      _
    // Predicated region
    $region54: #{spatial_encoder_forward.1} parent=1 // pred_check
      _
    $region55: #{spatial_encoder_forward.1} parent=1 // pred_check_branch
      %61 = sbr.rel (0) target = $region57
    $region56: #{spatial_encoder_forward.1} parent=1 // pred_region
      _
    $region57: #{spatial_encoder_forward.1} parent=1 // pred_fallthru
      _
    // Predicated region
    $region58: #{spatial_encoder_forward.1} parent=1 // pred_check
      _
    $region59: #{spatial_encoder_forward.1} parent=1 // pred_check_branch
      %63 = sbr.rel (0) target = $region61
    $region60: #{spatial_encoder_forward.1} parent=1 // pred_region
      _
    $region61: #{spatial_encoder_forward.1} parent=1 // pred_fallthru
      _
    // Predicated region
    $region62: #{spatial_encoder_forward.1} parent=1 // pred_check
      _
    $region63: #{spatial_encoder_forward.1} parent=1 // pred_check_branch
      %65 = sbr.rel (0) target = $region65
    $region64: #{spatial_encoder_forward.1} parent=1 // pred_region
      _
    $region65: #{spatial_encoder_forward.1} parent=1 // pred_fallthru
      _
    // Predicated region
    $region66: #{spatial_encoder_forward.1} parent=1 // pred_check
      _
    $region67: #{spatial_encoder_forward.1} parent=1 // pred_check_branch
      %67 = sbr.rel (0) target = $region69
    $region68: #{spatial_encoder_forward.1} parent=1 // pred_region
      _
    $region69: #{spatial_encoder_forward.1} parent=1 // pred_fallthru
      _
    // Predicated region
    $region70: #{spatial_encoder_forward.1} parent=1 // pred_check
      _
    $region71: #{spatial_encoder_forward.1} parent=1 // pred_check_branch
      %69 = sbr.rel (0) target = $region73
    $region72: #{spatial_encoder_forward.1} parent=1 // pred_region
      _
    $region73: #{spatial_encoder_forward.1} parent=1 // pred_fallthru
      _
    // Predicated region
    $region74: #{spatial_encoder_forward.1} parent=1 // pred_check
      _
    $region75: #{spatial_encoder_forward.1} parent=1 // pred_check_branch
      %71 = sbr.rel (0) target = $region77
    $region76: #{spatial_encoder_forward.1} parent=1 // pred_region
      _
    $region77: #{spatial_encoder_forward.1} parent=1 // pred_fallthru
      _
    // Predicated region
    $region78: #{spatial_encoder_forward.1} parent=1 // pred_check
      _
    $region79: #{spatial_encoder_forward.1} parent=1 // pred_check_branch
      %73 = sbr.rel (0) target = $region81
    $region80: #{spatial_encoder_forward.1} parent=1 // pred_region
      _
    $region81: #{spatial_encoder_forward.1} parent=1 // pred_fallthru
      _
    // Predicated region
    $region82: #{spatial_encoder_forward.1} parent=1 // pred_check
      _
    $region83: #{spatial_encoder_forward.1} parent=1 // pred_check_branch
      %75 = sbr.rel (0) target = $region85
    $region84: #{spatial_encoder_forward.1} parent=1 // pred_region
      _
    $region85: #{spatial_encoder_forward.1} parent=1 // pred_fallthru
      _
    // Predicated region
    $region86: #{spatial_encoder_forward.1} parent=1 // pred_check
      _
    $region87: #{spatial_encoder_forward.1} parent=1 // pred_check_branch
      %77 = sbr.rel (0) target = $region89
    $region88: #{spatial_encoder_forward.1} parent=1 // pred_region
      _
    $region89: #{spatial_encoder_forward.1} parent=1 // pred_fallthru
      _
    // Predicated region
    $region90: #{spatial_encoder_forward.1} parent=1 // pred_check
      _
    $region91: #{spatial_encoder_forward.1} parent=1 // pred_check_branch
      %79 = sbr.rel (0) target = $region93
    $region92: #{spatial_encoder_forward.1} parent=1 // pred_region
      _
    $region93: #{spatial_encoder_forward.1} parent=1 // pred_fallthru
      _
    // Predicated region
    $region94: #{spatial_encoder_forward.1} parent=1 // pred_check
      _
    $region95: #{spatial_encoder_forward.1} parent=1 // pred_check_branch
      %81 = sbr.rel (0) target = $region97
    $region96: #{spatial_encoder_forward.1} parent=1 // pred_region
      _
    $region97: #{spatial_encoder_forward.1} parent=1 // pred_fallthru
      _
    // Predicated region
    $region98: #{spatial_encoder_forward.1} parent=1 // pred_check
      _
    $region99: #{spatial_encoder_forward.1} parent=1 // pred_check_branch
      %83 = sbr.rel (0) target = $region101
    $region100: #{spatial_encoder_forward.1} parent=1 // pred_region
      _
    $region101: #{spatial_encoder_forward.1} parent=1 // pred_fallthru
      _
    %v84 = vld [vmem:[%s0] sm:$0xff]
    %v85 = vld [vmem:[%s0 + $0x8] sm:$0xff]
    %v86 = vld [vmem:[%s0 + $0x10] sm:$0xff]
    %v87 = vld [vmem:[%s0 + $0x18] sm:$0xff]
    %v88 = vld [vmem:[%s0 + $0x20] sm:$0xff]
    %v89 = vld [vmem:[%s0 + $0x28] sm:$0xff]
    %v90 = vld [vmem:[%s0 + $0x30] sm:$0xff]
    %v91 = vld [vmem:[%s0 + $0x38] sm:$0xff]
    %v92 = vld [vmem:[%s4] sm:$0xff]
    %v93 = vld [vmem:[%s5] sm:$0x1]
    %v95 = vperm.slane %v93, 0
    %vm97 = vcmask 64512
    %v99 = vsel %vm97, %v84, 0
    %v102 = vsel %vm97, %v85, 0
    %v105 = vsel %vm97, %v86, 0
    %v108 = vsel %vm97, %v87, 0
    %v111 = vsel %vm97, %v88, 0
    %v114 = vsel %vm97, %v89, 0
    %v117 = vsel %vm97, %v90, 0
    %v120 = vsel %vm97, %v91, 0
    %122 = vmatpush.msra.mxu0 0.0
    %123 = vmatpush.msra.mxu0 0.0
    %124 = vmatpush.msra.mxu0 0.0
    %125 = vmatpush.msra.mxu0 0.0
    %126 = vmatpush.msra.mxu0 0.0
    %127 = vmatpush.msra.mxu0 0.0
    %128 = vmatpush.msra.mxu0 0.0
    %129 = vmatpush.msra.mxu0 0.0
    %130 = vmatpush.msra.mxu0 0.0
    %131 = vmatpush.msra.mxu0 0.0
    %132 = vmatpush.msra.mxu0 0.0
    %133 = vmatpush.msra.mxu0 0.0
    %134 = vmatpush.msra.mxu0 0.0
    %135 = vmatpush.msra.mxu0 0.0
    %136 = vmatpush.msra.mxu0 0.0
    %137 = vmatpush.msra.mxu0 %v92
    %138 = vmatmul.f32.gmra.mxu0 %v99
    %v139 = vpop.f32.mrf.mxu0
    %v140 = vadd.f32 %v95, %v139
    %141 = vmatmul.f32.gmra.mxu0 %v102
    %v142 = vpop.f32.mrf.mxu0
    %v143 = vadd.f32 %v95, %v142
    %144 = vmatmul.f32.gmra.mxu0 %v105
    %v145 = vpop.f32.mrf.mxu0
    %v146 = vadd.f32 %v95, %v145
    %147 = vmatmul.f32.gmra.mxu0 %v108
    %v148 = vpop.f32.mrf.mxu0
    %v149 = vadd.f32 %v95, %v148
    %150 = vmatmul.f32.gmra.mxu0 %v111
    %v151 = vpop.f32.mrf.mxu0
    %v152 = vadd.f32 %v95, %v151
    %153 = vmatmul.f32.gmra.mxu0 %v114
    %v154 = vpop.f32.mrf.mxu0
    %v155 = vadd.f32 %v95, %v154
    %156 = vmatmul.f32.gmra.mxu0 %v117
    %v157 = vpop.f32.mrf.mxu0
    %v158 = vadd.f32 %v95, %v157
    %159 = vmatmul.f32.gmra.mxu0 %v120
    %v160 = vpop.f32.mrf.mxu0
    %v161 = vadd.f32 %v95, %v160
    %162 = vdwg.mxu0
    %v163 = vmax.f32 %v140, 0.0
    %v164 = vmax.f32 %v143, 0.0
    %v165 = vmax.f32 %v146, 0.0
    %v166 = vmax.f32 %v149, 0.0
    %v167 = vmax.f32 %v152, 0.0
    %v168 = vmax.f32 %v155, 0.0
    %v169 = vmax.f32 %v158, 0.0
    %v170 = vmax.f32 %v161, 0.0
    %v171 = vld [vmem:[%s6] sm:$0xff]
    %v172 = vld [vmem:[%s6 + $0x8] sm:$0xff]
    %v173 = vld [vmem:[%s6 + $0x10] sm:$0xff]
    %v174 = vld [vmem:[%s6 + $0x18] sm:$0xff]
    %v175 = vld [vmem:[%s7] sm:$0x1]
    %v177 = vperm.slane %v175, 0
    %vm179 = vcmask 261120
    %v181 = vsel %vm179, %v163, 0
    %v184 = vsel %vm179, %v164, 0
    %v187 = vsel %vm179, %v165, 0
    %v190 = vsel %vm179, %v166, 0
    %v193 = vsel %vm179, %v167, 0
    %v196 = vsel %vm179, %v168, 0
    %v199 = vsel %vm179, %v169, 0
    %v202 = vsel %vm179, %v170, 0
    %204 = vmatpush.msra.mxu0 0.0
    %205 = vmatpush.msra.mxu0 0.0
    %206 = vmatpush.msra.mxu0 0.0
    %207 = vmatpush.msra.mxu0 0.0
    %208 = vmatpush.msra.mxu0 0.0
    %209 = vmatpush.msra.mxu0 0.0
    %210 = vmatpush.msra.mxu0 0.0
    %211 = vmatpush.msra.mxu0 0.0
    %212 = vmatpush.msra.mxu0 0.0
    %213 = vmatpush.msra.mxu0 0.0
    %214 = vmatpush.msra.mxu0 0.0
    %215 = vmatpush.msra.mxu0 0.0
    %216 = vmatpush.msra.mxu0 %v174
    %217 = vmatpush.msra.mxu0 %v173
    %218 = vmatpush.msra.mxu0 %v172
    %219 = vmatpush.msra.mxu0 %v171
    %220 = vmatmul.f32.gmra.mxu0 %v181
    %v221 = vpop.f32.mrf.mxu0
    %v222 = vadd.f32 %v177, %v221
    %223 = vmatmul.f32.gmra.mxu0 %v184
    %v224 = vpop.f32.mrf.mxu0
    %v225 = vadd.f32 %v177, %v224
    %226 = vmatmul.f32.gmra.mxu0 %v187
    %v227 = vpop.f32.mrf.mxu0
    %v228 = vadd.f32 %v177, %v227
    %229 = vmatmul.f32.gmra.mxu0 %v190
    %v230 = vpop.f32.mrf.mxu0
    %v231 = vadd.f32 %v177, %v230
    %232 = vmatmul.f32.gmra.mxu0 %v193
    %v233 = vpop.f32.mrf.mxu0
    %v234 = vadd.f32 %v177, %v233
    %235 = vmatmul.f32.gmra.mxu0 %v196
    %v236 = vpop.f32.mrf.mxu0
    %v237 = vadd.f32 %v177, %v236
    %238 = vmatmul.f32.gmra.mxu0 %v199
    %v239 = vpop.f32.mrf.mxu0
    %v240 = vadd.f32 %v177, %v239
    %241 = vmatmul.f32.gmra.mxu0 %v202
    %v242 = vpop.f32.mrf.mxu0
    %v243 = vadd.f32 %v177, %v242
    %244 = vdwg.mxu0
    %v245 = vld [vmem:[%s1] sm:$0xff]
    %vm246 = vcmask 523264
    %v248 = vsel %vm246, %v245, 0
    %250 = vmatpush.msra.mxu0 0.0
    %251 = vmatpush.msra.mxu0 0.0
    %252 = vmatpush.msra.mxu0 0.0
    %253 = vmatpush.msra.mxu0 0.0
    %254 = vmatpush.msra.mxu0 0.0
    %255 = vmatpush.msra.mxu0 0.0
    %256 = vmatpush.msra.mxu0 0.0
    %257 = vmatpush.msra.mxu0 0.0
    %258 = vmatpush.msra.mxu0 %v243
    %259 = vmatpush.msra.mxu0 %v240
    %260 = vmatpush.msra.mxu0 %v237
    %261 = vmatpush.msra.mxu0 %v234
    %262 = vmatpush.msra.mxu0 %v231
    %263 = vmatpush.msra.mxu0 %v228
    %264 = vmatpush.msra.mxu0 %v225
    %265 = vmatpush.msra.mxu0 %v222
    %266 = vmatmul.f32.gmra.mxu0 %v248
    %v267 = vpop.f32.mrf.mxu0
    %v268 = vadd.f32 0.0, %v267
    %269 = vdwg.mxu0
    %v270 = vld [vmem:[%s2] sm:$0x3]
    %v272 = vsel %vm97, %v270, 0
    %274 = vmatpush.msra.mxu0 0.0
    %275 = vmatpush.msra.mxu0 0.0
    %276 = vmatpush.msra.mxu0 0.0
    %277 = vmatpush.msra.mxu0 0.0
    %278 = vmatpush.msra.mxu0 0.0
    %279 = vmatpush.msra.mxu0 0.0
    %280 = vmatpush.msra.mxu0 0.0
    %281 = vmatpush.msra.mxu0 0.0
    %282 = vmatpush.msra.mxu0 0.0
    %283 = vmatpush.msra.mxu0 0.0
    %284 = vmatpush.msra.mxu0 0.0
    %285 = vmatpush.msra.mxu0 0.0
    %286 = vmatpush.msra.mxu0 0.0
    %287 = vmatpush.msra.mxu0 0.0
    %288 = vmatpush.msra.mxu0 0.0
    %289 = vmatpush.msra.mxu0 %v268
    %290 = vmatmul.f32.gmra.mxu0 %v272
    %v291 = vpop.f32.mrf.mxu0
    %v292 = vadd.f32 0.0, %v291
    %293 = vdwg.mxu0
    %v294 = vld [vmem:[%s8] sm:$0xff]
    %v295 = vld [vmem:[%s8 + $0x8] sm:$0xff]
    %v296 = vld [vmem:[%s8 + $0x10] sm:$0xff]
    %v297 = vld [vmem:[%s8 + $0x18] sm:$0xff]
    %v298 = vld [vmem:[%s9] sm:$0x1]
    %v300 = vperm.slane %v298, 0
    %v303 = vsel %vm179, %v292, 0
    %305 = vmatpush.msra.mxu0 0.0
    %306 = vmatpush.msra.mxu0 0.0
    %307 = vmatpush.msra.mxu0 0.0
    %308 = vmatpush.msra.mxu0 0.0
    %309 = vmatpush.msra.mxu0 0.0
    %310 = vmatpush.msra.mxu0 0.0
    %311 = vmatpush.msra.mxu0 0.0
    %312 = vmatpush.msra.mxu0 0.0
    %313 = vmatpush.msra.mxu0 0.0
    %314 = vmatpush.msra.mxu0 0.0
    %315 = vmatpush.msra.mxu0 0.0
    %316 = vmatpush.msra.mxu0 0.0
    %317 = vmatpush.msra.mxu0 %v297
    %318 = vmatpush.msra.mxu0 %v296
    %319 = vmatpush.msra.mxu0 %v295
    %320 = vmatpush.msra.mxu0 %v294
    %321 = vmatmul.f32.gmra.mxu0 %v303
    %v322 = vpop.f32.mrf.mxu0
    %v323 = vadd.f32 %v300, %v322
    %324 = vdwg.mxu0
    %v325 = vmax.f32 %v323, 0.0
    %v326 = vld [vmem:[%s10] sm:$0xff]
    %v327 = vld [vmem:[%s10 + $0x8] sm:$0xff]
    %v328 = vld [vmem:[%s10 + $0x10] sm:$0xff]
    %v329 = vld [vmem:[%s10 + $0x18] sm:$0xff]
    %v330 = vld [vmem:[%s11] sm:$0x1]
    %v332 = vperm.slane %v330, 0
    %v335 = vsel %vm179, %v325, 0
    %337 = vmatpush.msra.mxu0 0.0
    %338 = vmatpush.msra.mxu0 0.0
    %339 = vmatpush.msra.mxu0 0.0
    %340 = vmatpush.msra.mxu0 0.0
    %341 = vmatpush.msra.mxu0 0.0
    %342 = vmatpush.msra.mxu0 0.0
    %343 = vmatpush.msra.mxu0 0.0
    %344 = vmatpush.msra.mxu0 0.0
    %345 = vmatpush.msra.mxu0 0.0
    %346 = vmatpush.msra.mxu0 0.0
    %347 = vmatpush.msra.mxu0 0.0
    %348 = vmatpush.msra.mxu0 0.0
    %349 = vmatpush.msra.mxu0 %v329
    %350 = vmatpush.msra.mxu0 %v328
    %351 = vmatpush.msra.mxu0 %v327
    %352 = vmatpush.msra.mxu0 %v326
    %353 = vmatmul.f32.gmra.mxu0 %v335
    %v354 = vpop.f32.mrf.mxu0
    %v355 = vadd.f32 %v332, %v354
    %356 = vdwg.mxu0
    %v357 = vld [vmem:[%s12] sm:$0xff]
    %v358 = vld [vmem:[%s12 + $0x8] sm:$0xff]
    %v359 = vld [vmem:[%s12 + $0x10] sm:$0xff]
    %v360 = vld [vmem:[%s12 + $0x18] sm:$0xff]
    %v361 = vld [vmem:[%s13] sm:$0x1]
    %v363 = vperm.slane %v361, 0
    %v366 = vsel %vm179, %v355, 0
    %368 = vmatpush.msra.mxu0 0.0
    %369 = vmatpush.msra.mxu0 0.0
    %370 = vmatpush.msra.mxu0 0.0
    %371 = vmatpush.msra.mxu0 0.0
    %372 = vmatpush.msra.mxu0 0.0
    %373 = vmatpush.msra.mxu0 0.0
    %374 = vmatpush.msra.mxu0 0.0
    %375 = vmatpush.msra.mxu0 0.0
    %376 = vmatpush.msra.mxu0 0.0
    %377 = vmatpush.msra.mxu0 0.0
    %378 = vmatpush.msra.mxu0 0.0
    %379 = vmatpush.msra.mxu0 0.0
    %380 = vmatpush.msra.mxu0 %v360
    %381 = vmatpush.msra.mxu0 %v359
    %382 = vmatpush.msra.mxu0 %v358
    %383 = vmatpush.msra.mxu0 %v357
    %384 = vmatmul.f32.gmra.mxu0 %v366
    %v385 = vpop.f32.mrf.mxu0
    %v386 = vadd.f32 %v363, %v385
    %387 = vdwg.mxu0
    %v388 = vld [vmem:[%s14] sm:$0xff]
    %v389 = vld [vmem:[%s14 + $0x8] sm:$0xff]
    %v390 = vld [vmem:[%s14 + $0x10] sm:$0xff]
    %v391 = vld [vmem:[%s14 + $0x18] sm:$0xff]
    %v392 = vld [vmem:[%s15] sm:$0x1]
    %v394 = vperm.slane %v392, 0
    %v397 = vsel %vm179, %v386, 0
    %399 = vmatpush.msra.mxu0 0.0
    %400 = vmatpush.msra.mxu0 0.0
    %401 = vmatpush.msra.mxu0 0.0
    %402 = vmatpush.msra.mxu0 0.0
    %403 = vmatpush.msra.mxu0 0.0
    %404 = vmatpush.msra.mxu0 0.0
    %405 = vmatpush.msra.mxu0 0.0
    %406 = vmatpush.msra.mxu0 0.0
    %407 = vmatpush.msra.mxu0 0.0
    %408 = vmatpush.msra.mxu0 0.0
    %409 = vmatpush.msra.mxu0 0.0
    %410 = vmatpush.msra.mxu0 0.0
    %411 = vmatpush.msra.mxu0 %v391
    %412 = vmatpush.msra.mxu0 %v390
    %413 = vmatpush.msra.mxu0 %v389
    %414 = vmatpush.msra.mxu0 %v388
    %415 = vmatmul.f32.gmra.mxu0 %v397
    %v416 = vpop.f32.mrf.mxu0
    %v417 = vadd.f32 %v394, %v416
    %418 = vdwg.mxu0
    %vm419 = vcmask 254976
    %420 = vst.msk [vmem:[#allocation4] sm:$0x3] %vm419, %v417
    %v421 = vld [vmem:[%s3] sm:$0xff]
    %v422 = vld [vmem:[%s17] sm:$0xff]
    %v423 = vld [vmem:[%s17 + $0x8] sm:$0xff]
    %v424 = vld [vmem:[%s17 + $0x10] sm:$0xff]
    %v425 = vld [vmem:[%s17 + $0x18] sm:$0xff]
    %v427 = vsel %vm179, %v417, 0
    %429 = vmatpush.msra.mxu0 0.0
    %430 = vmatpush.msra.mxu0 0.0
    %431 = vmatpush.msra.mxu0 0.0
    %432 = vmatpush.msra.mxu0 0.0
    %433 = vmatpush.msra.mxu0 0.0
    %434 = vmatpush.msra.mxu0 0.0
    %435 = vmatpush.msra.mxu0 0.0
    %436 = vmatpush.msra.mxu0 0.0
    %437 = vmatpush.msra.mxu0 0.0
    %438 = vmatpush.msra.mxu0 0.0
    %439 = vmatpush.msra.mxu0 0.0
    %440 = vmatpush.msra.mxu0 0.0
    %441 = vmatpush.msra.mxu0 %v425
    %442 = vmatpush.msra.mxu0 %v424
    %443 = vmatpush.msra.mxu0 %v423
    %444 = vmatpush.msra.mxu0 %v422
    %445 = vmatmul.f32.gmra.mxu0 %v427
    %v446 = vpop.f32.mrf.mxu0
    %v447 = vadd.f32 0.0, %v446
    %448 = vdwg.mxu0
    %vm449 = vcmask 15360
    %v451 = vsel %vm449, %v421, 0
    %vm453 = vcmask 1041408
    %v455 = vsel %vm453, %v447, 0
    %457 = vmatpush.msra.mxu0 0.0
    %458 = vmatpush.msra.mxu0 0.0
    %459 = vmatpush.msra.mxu0 0.0
    %460 = vmatpush.msra.mxu0 0.0
    %461 = vmatpush.msra.mxu0 0.0
    %462 = vmatpush.msra.mxu0 0.0
    %463 = vmatpush.msra.mxu0 0.0
    %464 = vmatpush.msra.mxu0 0.0
    %465 = vmatpush.msra.mxu0 0.0
    %466 = vmatpush.msra.mxu0 0.0
    %467 = vmatpush.msra.mxu0 0.0
    %468 = vmatpush.msra.mxu0 0.0
    %469 = vmatpush.msra.mxu0 0.0
    %470 = vmatpush.msra.mxu0 0.0
    %471 = vmatpush.msra.mxu0 0.0
    %472 = vmatpush.msra.mxu0 %v455
    %473 = vmatmul.f32.gmra.mxu0 %v451
    %v474 = vpop.f32.mrf.mxu0
    %v475 = vadd.f32 0.0, %v474
    %476 = vdwg.mxu0
    %v477 = vld [vmem:[%s16] sm:$0xff]
    %v478 = vld [vmem:[%s16 + $0x8] sm:$0xff]
    %v479 = vld [vmem:[%s16 + $0x10] sm:$0xff]
    %v480 = vld [vmem:[%s16 + $0x18] sm:$0xff]
    %v482 = vsel %vm179, %v268, 0
    %484 = vmatpush.msra.mxu0 0.0
    %485 = vmatpush.msra.mxu0 0.0
    %486 = vmatpush.msra.mxu0 0.0
    %487 = vmatpush.msra.mxu0 0.0
    %488 = vmatpush.msra.mxu0 0.0
    %489 = vmatpush.msra.mxu0 0.0
    %490 = vmatpush.msra.mxu0 0.0
    %491 = vmatpush.msra.mxu0 0.0
    %492 = vmatpush.msra.mxu0 0.0
    %493 = vmatpush.msra.mxu0 0.0
    %494 = vmatpush.msra.mxu0 0.0
    %495 = vmatpush.msra.mxu0 0.0
    %496 = vmatpush.msra.mxu0 %v480
    %497 = vmatpush.msra.mxu0 %v479
    %498 = vmatpush.msra.mxu0 %v478
    %499 = vmatpush.msra.mxu0 %v477
    %500 = vmatmul.f32.gmra.mxu0 %v482
    %v501 = vpop.f32.mrf.mxu0
    %v502 = vadd.f32 %v475, %v501
    %503 = vdwg.mxu0
    %v504 = vld [vmem:[%s18] sm:$0x1]
    %v506 = vperm.slane %v504, 0
    %v508 = vadd.f32 %v502, %v506
    %v509 = vmax.f32 %v508, 0.0
    %v510 = vld [vmem:[%s19] sm:$0xff]
    %v511 = vld [vmem:[%s19 + $0x8] sm:$0xff]
    %v512 = vld [vmem:[%s19 + $0x10] sm:$0xff]
    %v513 = vld [vmem:[%s19 + $0x18] sm:$0xff]
    %v514 = vld [vmem:[%s20] sm:$0x1]
    %v516 = vperm.slane %v514, 0
    %v519 = vsel %vm179, %v509, 0
    %521 = vmatpush.msra.mxu0 0.0
    %522 = vmatpush.msra.mxu0 0.0
    %523 = vmatpush.msra.mxu0 0.0
    %524 = vmatpush.msra.mxu0 0.0
    %525 = vmatpush.msra.mxu0 0.0
    %526 = vmatpush.msra.mxu0 0.0
    %527 = vmatpush.msra.mxu0 0.0
    %528 = vmatpush.msra.mxu0 0.0
    %529 = vmatpush.msra.mxu0 0.0
    %530 = vmatpush.msra.mxu0 0.0
    %531 = vmatpush.msra.mxu0 0.0
    %532 = vmatpush.msra.mxu0 0.0
    %533 = vmatpush.msra.mxu0 %v513
    %534 = vmatpush.msra.mxu0 %v512
    %535 = vmatpush.msra.mxu0 %v511
    %536 = vmatpush.msra.mxu0 %v510
    %537 = vmatmul.f32.gmra.mxu0 %v519
    %v538 = vpop.f32.mrf.mxu0
    %v539 = vadd.f32 %v516, %v538
    %540 = vdwg.mxu0
    %v541 = vld [vmem:[%s2] sm:$0x3]
    %v543 = vsel %vm97, %v541, 0
    %545 = vmatpush.msra.mxu0 0.0
    %546 = vmatpush.msra.mxu0 0.0
    %547 = vmatpush.msra.mxu0 0.0
    %548 = vmatpush.msra.mxu0 0.0
    %549 = vmatpush.msra.mxu0 0.0
    %550 = vmatpush.msra.mxu0 0.0
    %551 = vmatpush.msra.mxu0 0.0
    %552 = vmatpush.msra.mxu0 0.0
    %553 = vmatpush.msra.mxu0 0.0
    %554 = vmatpush.msra.mxu0 0.0
    %555 = vmatpush.msra.mxu0 0.0
    %556 = vmatpush.msra.mxu0 0.0
    %557 = vmatpush.msra.mxu0 0.0
    %558 = vmatpush.msra.mxu0 0.0
    %559 = vmatpush.msra.mxu0 0.0
    %560 = vmatpush.msra.mxu0 %v539
    %561 = vmatmul.f32.gmra.mxu0 %v543
    %v562 = vpop.f32.mrf.mxu0
    %v563 = vadd.f32 0.0, %v562
    %564 = vdwg.mxu0
    %v565 = vld [vmem:[%s21] sm:$0xff]
    %v566 = vld [vmem:[%s21 + $0x8] sm:$0xff]
    %v567 = vld [vmem:[%s21 + $0x10] sm:$0xff]
    %v568 = vld [vmem:[%s21 + $0x18] sm:$0xff]
    %v569 = vld [vmem:[%s22] sm:$0x1]
    %v571 = vperm.slane %v569, 0
    %v574 = vsel %vm179, %v563, 0
    %576 = vmatpush.msra.mxu0 0.0
    %577 = vmatpush.msra.mxu0 0.0
    %578 = vmatpush.msra.mxu0 0.0
    %579 = vmatpush.msra.mxu0 0.0
    %580 = vmatpush.msra.mxu0 0.0
    %581 = vmatpush.msra.mxu0 0.0
    %582 = vmatpush.msra.mxu0 0.0
    %583 = vmatpush.msra.mxu0 0.0
    %584 = vmatpush.msra.mxu0 0.0
    %585 = vmatpush.msra.mxu0 0.0
    %586 = vmatpush.msra.mxu0 0.0
    %587 = vmatpush.msra.mxu0 0.0
    %588 = vmatpush.msra.mxu0 %v568
    %589 = vmatpush.msra.mxu0 %v567
    %590 = vmatpush.msra.mxu0 %v566
    %591 = vmatpush.msra.mxu0 %v565
    %592 = vmatmul.f32.gmra.mxu0 %v574
    %v593 = vpop.f32.mrf.mxu0
    %v594 = vadd.f32 %v571, %v593
    %595 = vdwg.mxu0
    %v596 = vmax.f32 %v594, 0.0
    %v597 = vld [vmem:[%s23] sm:$0xff]
    %v598 = vld [vmem:[%s23 + $0x8] sm:$0xff]
    %v599 = vld [vmem:[%s23 + $0x10] sm:$0xff]
    %v600 = vld [vmem:[%s23 + $0x18] sm:$0xff]
    %v601 = vld [vmem:[%s24] sm:$0x1]
    %v603 = vperm.slane %v601, 0
    %v606 = vsel %vm179, %v596, 0
    %608 = vmatpush.msra.mxu0 0.0
    %609 = vmatpush.msra.mxu0 0.0
    %610 = vmatpush.msra.mxu0 0.0
    %611 = vmatpush.msra.mxu0 0.0
    %612 = vmatpush.msra.mxu0 0.0
    %613 = vmatpush.msra.mxu0 0.0
    %614 = vmatpush.msra.mxu0 0.0
    %615 = vmatpush.msra.mxu0 0.0
    %616 = vmatpush.msra.mxu0 0.0
    %617 = vmatpush.msra.mxu0 0.0
    %618 = vmatpush.msra.mxu0 0.0
    %619 = vmatpush.msra.mxu0 0.0
    %620 = vmatpush.msra.mxu0 %v600
    %621 = vmatpush.msra.mxu0 %v599
    %622 = vmatpush.msra.mxu0 %v598
    %623 = vmatpush.msra.mxu0 %v597
    %624 = vmatmul.f32.gmra.mxu0 %v606
    %v625 = vpop.f32.mrf.mxu0
    %v626 = vadd.f32 %v603, %v625
    %627 = vdwg.mxu0
    %vm628 = vcmask 58368
    %629 = vst.msk [vmem:[#allocation2] sm:$0x3] %vm628, %v626
    // Predicated region
    $region102: #{spatial_encoder_forward.1} parent=1 // pred_check
      _
    $region103: #{spatial_encoder_forward.1} parent=1 // pred_check_branch
      %631 = sbr.rel (0) target = $region105
    $region104: #{spatial_encoder_forward.1} parent=1 // pred_region
      %633 = vsyncadd [#allocation3], 0
      %s635 = sshll.u32 [#allocation2], 4
      %s636 = int_to_ptr.vmem [resolvable:$true] %s635
      %s637 = sshll.u32 %s25, 4
      %s638 = int_to_ptr.hbm [resolvable:$true] %s637
      %640 = dma.vmem_to_hbm [thread:$0]  %s636, 32, %s638, [#allocation3]
    $region105: #{spatial_encoder_forward.1} parent=1 // pred_fallthru
      _
    // Predicated region
    $region106: #{spatial_encoder_forward.1} parent=1 // pred_check
      _
    $region107: #{spatial_encoder_forward.1} parent=1 // pred_check_branch
      %642 = sbr.rel (0) target = $region109
    $region108: #{spatial_encoder_forward.1} parent=1 // pred_region
      %644 = vsyncadd [#allocation5], 0
      %s646 = sshll.u32 [#allocation4], 4
      %s647 = int_to_ptr.vmem [resolvable:$true] %s646
      %s648 = sshll.u32 %s26, 4
      %s649 = int_to_ptr.hbm [resolvable:$true] %s648
      %651 = dma.vmem_to_hbm [thread:$0]  %s647, 32, %s649, [#allocation5]
    $region109: #{spatial_encoder_forward.1} parent=1 // pred_fallthru
      _
    // Predicated region
    $region110: #{spatial_encoder_forward.1} parent=1 // pred_check
      _
    $region111: #{spatial_encoder_forward.1} parent=1 // pred_check_branch
      %653 = sbr.rel (0) target = $region113
    $region112: #{spatial_encoder_forward.1} parent=1 // pred_region
      %655 = dma.done [#allocation3], 32
    $region113: #{spatial_encoder_forward.1} parent=1 // pred_fallthru
      _
    // Predicated region
    $region114: #{spatial_encoder_forward.1} parent=1 // pred_check
      _
    $region115: #{spatial_encoder_forward.1} parent=1 // pred_check_branch
      %657 = sbr.rel (0) target = $region117
    $region116: #{spatial_encoder_forward.1} parent=1 // pred_region
      %659 = dma.done [#allocation5], 32
    $region117: #{spatial_encoder_forward.1} parent=1 // pred_fallthru
      _
    %660 = vsyncpa [#allocation3], 1
    %661 = vsyncpa [#allocation5], 1

</llo_original>
